<compile_context>
chip_gen: v5e
topology: v5e:2x2
jax: 0.10.0
libtpu: 0.0.40
codegen_flags: <defaults>
</compile_context>

<pallas_src>
import functools

import jax
import jax.numpy as jnp
from jax.experimental import pallas as pl
from jax.experimental.pallas import tpu as pltpu

BN_EPS = 1e-5
_VMEM_LIMIT = 32 * 1024 * 1024     # safe scoped-VMEM ceiling on v5e/v6e/v7x
_VMEM_BUDGET = 26 * 1024 * 1024    # planning budget (headroom below the limit)


def _round_up(x, m):
    return ((x + m - 1) // m) * m


def _pad2(x, rows, cols):
    return jnp.pad(x, ((0, rows - x.shape[0]), (0, cols - x.shape[1])))


def _auto_tiles(n):
    """(tm, tk) for the (dst, src) message-passing grid.

    Big tiles amortize the ~0.35us/step overhead; tm stays small enough on small
    graphs that there are >= 2 dst blocks (both v7x TensorCores busy)."""
    if n >= 1024:
        tm = 512
    elif n >= 512:
        tm = 256
    else:
        tm = 128
    tk = min(_round_up(n, 128), 2048)
    return tm, tk


# ---------------------------------------------------------------------------
# Kernel 1: Bh = h @ Wb' + bb'  (BatchNorm eval folded into Wb'/bb'), bf16 out.
# ---------------------------------------------------------------------------
def _bh_kernel(h_ref, wb_ref, bb_ref, bh_ref):
    bh_ref[...] = (jnp.dot(h_ref[...], wb_ref[...],
                           preferred_element_type=jnp.float32)
                   + bb_ref[...]).astype(jnp.bfloat16)


# ---------------------------------------------------------------------------
# Kernel 2: out[i] = ReLU( h[i] @ Wa' + ba' + sum_k adj[i,k] @ Bh[k] )  (+ h[i])
#   out_ref doubles as the f32 accumulator (same block index across k).
# ---------------------------------------------------------------------------
def _make_msg_kernel(residual, bh_resident, tk):
    def kernel(adj_ref, bh_ref, h_ref, wa_ref, ba_ref, out_ref):
        k = pl.program_id(1)

        @pl.when(k == 0)
        def _init():
            # Ah (bias + folded BN) computed in-place -> no Ah HBM round trip.
            out_ref[...] = (jnp.dot(h_ref[...], wa_ref[...],
                                    preferred_element_type=jnp.float32)
                            + ba_ref[...])

        if bh_resident:
            start = pl.multiple_of(k * tk, tk)
            bh_tile = bh_ref[pl.ds(start, tk), :]
        else:
            bh_tile = bh_ref[...]
        out_ref[...] += jnp.dot(adj_ref[...], bh_tile,
                                preferred_element_type=jnp.float32)

        @pl.when(k == pl.num_programs(1) - 1)
        def _finalize():
            x = jnp.maximum(out_ref[...], 0.0)
            if residual:
                x = h_ref[...] + x      # residual only when d_in == d_out
            out_ref[...] = x
            # TODO(synk): dropout skipped (training=False / eval semantics).

    return kernel


def gated_gcn_forward(h, e, adj, params, *, residual=True,
                      tm=None, tk=None, bh_resident=None):
    """GatedGCNLayerIsotropic forward (eval mode). Returns (h_new, e).

    h:   [N, D_in] f32, adj: [N, N] dense (adj[v, u] = 1 iff edge u -> v),
    e:   edge features, passed through unchanged.
    params: 'wa' [D_in,D_out], 'ba' [1,D_out], 'wb', 'bb',
            'gamma', 'beta', 'mean', 'var' (each [1, D_out]).
    """
    n, d_in = h.shape
    d_out = params["wa"].shape[1]
    if residual and d_in != d_out:
        residual = False

    if tm is None or tk is None:
        tm, tk = _auto_tiles(n)
    d_in_pad = _round_up(d_in, 128)
    d_out_pad = _round_up(d_out, 128)
    n_dst_pad = _round_up(n, tm)        # adjacency rows / h dst rows / out rows
    n_src_pad = _round_up(n, tk)        # adjacency cols / Bh rows

    # VMEM budget for kernel 2 -> decide whether Bh can stay fully resident.
    fixed_vmem = (2 * tm * tk * 2              # adj tiles (bf16, double-buffered)
                  + 2 * tm * d_in_pad * 4      # h dst tiles (f32)
                  + d_in_pad * d_out_pad * 4   # Wa' (resident)
                  + 2 * tm * d_out_pad * 4     # out / accumulator buffers
                  + 2 * d_out_pad * 4)         # ba'
    if bh_resident is None:
        bh_resident = (fixed_vmem + 2 * n_src_pad * d_out_pad * 2) <= _VMEM_BUDGET

    # --- host-side prep: fold BN(eval) into the linears, pad ----------------
    s = params["gamma"] * jax.lax.rsqrt(params["var"] + BN_EPS)      # (1, d_out)
    wa_p = _pad2(params["wa"] * s, d_in_pad, d_out_pad).astype(jnp.float32)
    wb_p = _pad2(params["wb"] * s, d_in_pad, d_out_pad).astype(jnp.float32)
    ba_p = _pad2(params["ba"] * s + params["beta"] - params["mean"] * s,
                 1, d_out_pad).astype(jnp.float32)
    bb_p = _pad2(params["bb"] * s, 1, d_out_pad).astype(jnp.float32)

    n_h_pad = max(n_dst_pad, n_src_pad)
    h_p = _pad2(h.astype(jnp.float32), n_h_pad, d_in_pad)
    # adjacency is 0/1 -> exact in bf16; cast *before* padding so the prep is a
    # single fused pad+convert pass over the O(N^2) array.
    adj_p = _pad2(adj.astype(jnp.bfloat16), n_dst_pad, n_src_pad)

    # --- kernel 1: Bh (bf16), large independent row tile ---------------------
    tm1 = tk if tk <= 1024 else 1024            # divides n_src_pad
    bh = pl.pallas_call(
        _bh_kernel,
        grid=(n_src_pad // tm1,),
        in_specs=[
            pl.BlockSpec((tm1, d_in_pad), lambda i: (i, 0)),
            pl.BlockSpec((d_in_pad, d_out_pad), lambda i: (0, 0)),   # resident
            pl.BlockSpec((1, d_out_pad), lambda i: (0, 0)),          # resident
        ],
        out_specs=pl.BlockSpec((tm1, d_out_pad), lambda i: (i, 0)),
        out_shape=jax.ShapeDtypeStruct((n_src_pad, d_out_pad), jnp.bfloat16),
        compiler_params=pltpu.CompilerParams(
            dimension_semantics=("parallel",),
            vmem_limit_bytes=_VMEM_LIMIT),
    )(h_p, wb_p, bb_p)

    # --- kernel 2: Ah init + adj @ Bh accumulate + epilogue ------------------
    if bh_resident:
        bh_spec = pl.BlockSpec((n_src_pad, d_out_pad), lambda i, k: (0, 0))
    else:
        bh_spec = pl.BlockSpec((tk, d_out_pad), lambda i, k: (k, 0))

    out = pl.pallas_call(
        _make_msg_kernel(residual, bh_resident, tk),
        grid=(n_dst_pad // tm, n_src_pad // tk),
        in_specs=[
            pl.BlockSpec((tm, tk), lambda i, k: (i, k)),              # adj (bf16)
            bh_spec,                                                  # Bh (bf16)
            pl.BlockSpec((tm, d_in_pad), lambda i, k: (i, 0)),        # h dst (f32)
            pl.BlockSpec((d_in_pad, d_out_pad), lambda i, k: (0, 0)), # Wa' resident
            pl.BlockSpec((1, d_out_pad), lambda i, k: (0, 0)),        # ba' resident
        ],
        out_specs=pl.BlockSpec((tm, d_out_pad), lambda i, k: (i, 0)),
        out_shape=jax.ShapeDtypeStruct((n_dst_pad, d_out_pad), jnp.float32),
        compiler_params=pltpu.CompilerParams(
            dimension_semantics=("parallel", "arbitrary"),
            vmem_limit_bytes=_VMEM_LIMIT),
    )(adj_p, bh, h_p, wa_p, ba_p)

    # TODO(synk): for sparse production graphs, replace the dense adj @ Bh with
    # a CSR gather via PrefetchScalarGridSpec (edge-count-bound instead of N^2).
    return out[:n, :d_out], e


# --------------------------- references (host) ------------------------------
def _reference_f32(h, adj, p, residual=True):
    if residual and p["wa"].shape[0] != p["wa"].shape[1]:
        residual = False
    ah = h @ p["wa"] + p["ba"]
    bh = h @ p["wb"] + p["bb"]
    x = ah + adj @ bh
    x = (x - p["mean"]) * jax.lax.rsqrt(p["var"] + BN_EPS) * p["gamma"] + p["beta"]
    x = jnp.maximum(x, 0.0)
    return h + x if residual else x


def _reference_bf16_msg(h, adj, p, residual=True):
    # Mirrors the kernel's only intentional approximation: Bh is rounded to
    # bfloat16 before the (exact 0/1) adjacency matmul; everything else f32.
    if residual and p["wa"].shape[0] != p["wa"].shape[1]:
        residual = False
    s = p["gamma"] * jax.lax.rsqrt(p["var"] + BN_EPS)
    ah = h @ (p["wa"] * s) + (p["ba"] * s + p["beta"] - p["mean"] * s)
    bh = (h @ (p["wb"] * s) + p["bb"] * s).astype(jnp.bfloat16).astype(jnp.float32)
    x = jnp.maximum(ah + adj @ bh, 0.0)
    return h + x if residual else x


def _make_case(key, n, d_in, d_out, n_edge_feats, density):
    ks = jax.random.split(key, 9)
    h = jax.random.normal(ks[0], (n, d_in), dtype=jnp.float32)
    e = jax.random.normal(ks[1], (n_edge_feats, d_out), dtype=jnp.float32)
    adj = (jax.random.uniform(ks[2], (n, n)) < density).astype(jnp.float32)
    adj = adj * (1.0 - jnp.eye(n, dtype=jnp.float32))      # no self-loops
    bound = 1.0 / (d_in ** 0.5)
    params = {
        "wa": jax.random.uniform(ks[3], (d_in, d_out), minval=-bound, maxval=bound),
        "ba": jax.random.uniform(ks[4], (1, d_out), minval=-bound, maxval=bound),
        "wb": jax.random.uniform(ks[5], (d_in, d_out), minval=-bound, maxval=bound),
        "bb": jax.random.uniform(ks[6], (1, d_out), minval=-bound, maxval=bound),
        "gamma": 1.0 + 0.1 * jax.random.normal(ks[7], (1, d_out)),
        "beta": 0.1 * jax.random.normal(ks[8], (1, d_out)),
        "mean": jnp.zeros((1, d_out), jnp.float32),
        "var": jnp.ones((1, d_out), jnp.float32),
    }
    params = {k: v.astype(jnp.float32) for k, v in params.items()}
    return h, e, adj, params


if __name__ == "__main__":
    key = jax.random.PRNGKey(0)
    k1, k2 = jax.random.split(key)

    # Case 1: residual active (d_in == d_out); tiny graph, single-tile grid,
    # Bh resident.
    h, e, adj, params = _make_case(k1, n=8, d_in=32, d_out=32,
                                   n_edge_feats=16, density=0.3)
    h_out, e_out = gated_gcn_forward(h, e, adj, params, residual=True)
    h_out = jax.block_until_ready(h_out)
    assert h_out.shape == (8, 32) and e_out.shape == (16, 32)
    # Structural check (kernel math incl. the intended bf16 Bh rounding).
    assert jnp.allclose(h_out, _reference_bf16_msg(h, adj, params, True),
                        atol=2e-3, rtol=2e-3)
    # Loose check vs pure-f32 module math.
    assert jnp.allclose(h_out, _reference_f32(h, adj, params, True),
                        atol=2e-2, rtol=2e-2)

    # Case 2: d_in != d_out (residual auto-disabled), explicit tm=128 / tk=256
    # -> multi-step (dst, src) reduction grid with *independent* row/col
    # padding (384 x 512) and resident Bh.
    h2, e2, adj2, params2 = _make_case(k2, n=260, d_in=48, d_out=64,
                                       n_edge_feats=32, density=0.05)
    h2_out, e2_out = gated_gcn_forward(h2, e2, adj2, params2,
                                       residual=True, tm=128, tk=256)
    h2_out = jax.block_until_ready(h2_out)
    assert h2_out.shape == (260, 64) and e2_out.shape == (32, 64)
    assert jnp.allclose(h2_out, _reference_bf16_msg(h2, adj2, params2, True),
                        atol=2e-3, rtol=2e-3)
    assert jnp.allclose(h2_out, _reference_f32(h2, adj2, params2, True),
                        atol=5e-2, rtol=5e-2)

    # Case 3: same graph, force the streaming-Bh fallback path (tk=128 ->
    # 3 reduction steps) and check it matches the resident-path math.
    h3_out, _ = gated_gcn_forward(h2, e2, adj2, params2, residual=True,
                                  tm=128, tk=128, bh_resident=False)
    h3_out = jax.block_until_ready(h3_out)
    assert jnp.allclose(h3_out, _reference_bf16_msg(h2, adj2, params2, True),
                        atol=2e-3, rtol=2e-3)

    print("KERNEL_OK")
</pallas_src>

<mosaic_0001>
module attributes {stable_mosaic.version = 11 : i64} {
  func.func @_bh_kernel(%arg0: i32, %arg1: memref<128x128xf32, #tpu.memory_space<vmem>>, %arg2: memref<128x128xf32, #tpu.memory_space<vmem>>, %arg3: memref<1x128xf32, #tpu.memory_space<vmem>>, %arg4: memref<128x128xbf16, #tpu.memory_space<vmem>>) attributes {dimension_semantics = [#tpu.dimension_semantics<parallel>], iteration_bounds = array<i64: 1>, scalar_prefetch = 0 : i64, scratch_operands = 0 : i64, tpu.core_type = #tpu.core_type<tc>, window_params = [{transform_indices = @transform_0, window_bounds = array<i64: 128, 128>}, {pipeline_mode = #tpu.pipeline_mode<synchronous>, transform_indices = @transform_1, window_bounds = array<i64: 128, 128>}, {pipeline_mode = #tpu.pipeline_mode<synchronous>, transform_indices = @transform_2, window_bounds = array<i64: 1, 128>}, {transform_indices = @transform_3, window_bounds = array<i64: 128, 128>}]} {
    %c0 = arith.constant 0 : index
    %c0_0 = arith.constant 0 : index
    %0 = vector.load %arg1[%c0, %c0_0] : memref<128x128xf32, #tpu.memory_space<vmem>>, vector<128x128xf32>
    %c0_1 = arith.constant 0 : index
    %c0_2 = arith.constant 0 : index
    %1 = vector.load %arg2[%c0_1, %c0_2] : memref<128x128xf32, #tpu.memory_space<vmem>>, vector<128x128xf32>
    %cst = arith.constant dense<0.000000e+00> : vector<128x128xf32>
    %2 = tpu.matmul %0, %1, %cst {dimension_numbers = #tpu.dot_dimension_numbers<[1], [0], [0], [1], [0, 0, 1, 1], [], []>} : vector<128x128xf32>, vector<128x128xf32>, vector<128x128xf32> -> vector<128x128xf32>
    %c0_3 = arith.constant 0 : index
    %c0_4 = arith.constant 0 : index
    %3 = vector.load %arg3[%c0_3, %c0_4] : memref<1x128xf32, #tpu.memory_space<vmem>>, vector<1x128xf32>
    %4 = vector.broadcast %3 : vector<1x128xf32> to vector<128x128xf32>
    %5 = arith.addf %2, %4 : vector<128x128xf32>
    %6 = arith.truncf %5 : vector<128x128xf32> to vector<128x128xbf16>
    %c0_5 = arith.constant 0 : index
    %c0_6 = arith.constant 0 : index
    %7 = vector.load %arg4[%c0_5, %c0_6] : memref<128x128xbf16, #tpu.memory_space<vmem>>, vector<128x128xbf16>
    tpu.vector_store %arg4[%c0_5, %c0_6], %6 {strides = array<i32>} : memref<128x128xbf16, #tpu.memory_space<vmem>>, vector<128x128xbf16>,
    return
  }
  func.func @transform_0(%arg0: i32) -> (i32, i32) {
    %c0_i32 = arith.constant 0 : i32
    %c0_i32_0 = arith.constant 0 : i32
    return %arg0, %c0_i32 : i32, i32
  }
  func.func @transform_1(%arg0: i32) -> (i32, i32) {
    %c0_i32 = arith.constant 0 : i32
    %c0_i32_0 = arith.constant 0 : i32
    %c0_i32_1 = arith.constant 0 : i32
    return %c0_i32, %c0_i32_0 : i32, i32
  }
  func.func @transform_2(%arg0: i32) -> (i32, i32) {
    %c0_i32 = arith.constant 0 : i32
    %c0_i32_0 = arith.constant 0 : i32
    %c0_i32_1 = arith.constant 0 : i32
    return %c0_i32, %c0_i32_0 : i32, i32
  }
  func.func @transform_3(%arg0: i32) -> (i32, i32) {
    %c0_i32 = arith.constant 0 : i32
    %c0_i32_0 = arith.constant 0 : i32
    return %arg0, %c0_i32 : i32, i32
  }
}

</mosaic_0001>

<llo_original>
// kernel: tpu_custom_call.1
$region0: #{tpu_custom_call.1}
  #allocation0 [shape = 'u32[]', space=smem, size = 0x4, offset = 0x4, fixed_abs, tag = 'smem constant byte address 0x4 - core index']
  #allocation1 [shape = 'u32[72,128]{1,0:T(1,128)}', space=vmem, size = 0x9000, scoped, tag = 'internal scratch']
  %s0 = inlined_call_operand.hbm [shape: f32[128,128], index: 0, kind: input, shape index: {}]
  %s1 = inlined_call_operand.hbm [shape: f32[128,128], index: 1, kind: input, shape index: {}]
  %s2 = inlined_call_operand.vmem [shape: f32[1,128], index: 2, kind: input, shape index: {}]
  %s3 = inlined_call_operand.hbm [shape: bf16[128,128], index: 3, kind: output, shape index: {}]
  %s4 = sld [smem:[#allocation0]]
  $region30: #{tpu_custom_call.1} parent=0
    _
  %s6 = ssub.s32 1, %s4
  %s7 = scalar_select 0, %s6, %s4
  $region1: #{tpu_custom_call.1} parent=0
    #allocation2 [shape = 'u8[65536]{0}', space=vmem, size = 0x10000, scoped, tag = 'input window, operand 0, single buffered']
    #allocation3 [shape = 's32[1]{0}', space=sflag, size = 0x4, scoped, tag = 'scoped memory for tpu_custom_call.1']
    #allocation4 [shape = 's32[1]{0}', space=sflag, size = 0x4, scoped, tag = 'scoped memory for tpu_custom_call.1']
    #allocation5 [shape = 'u8[65536]{0}', space=vmem, size = 0x10000, scoped, tag = 'input window, operand 1, single buffered']
    #allocation6 [shape = 's32[1]{0}', space=sflag, size = 0x4, scoped, tag = 'scoped memory for tpu_custom_call.1']
    #allocation7 [shape = 'u8[32768]{0}', space=vmem, size = 0x8000, scoped, tag = 'output window, operand 0, single buffered']
    %8 = vsyncpa [#allocation3], 0
    %9 = vsyncpa [#allocation6], 0
    %10 = vsyncpa [#allocation4], 0
    // Predicated region
    $region2: #{tpu_custom_call.1} parent=1 // pred_check
      _
    $region3: #{tpu_custom_call.1} parent=1 // pred_check_branch
      %12 = sbr.rel (0) target = $region5
    $region4: #{tpu_custom_call.1} parent=1 // pred_region
      %14 = vsyncadd [#allocation3], 0
      %s15 = sshll.u32 %s0, 4
      %s16 = int_to_ptr.hbm [resolvable:$true] %s15
      %s17 = sshll.u32 [#allocation2], 4
      %s18 = int_to_ptr.vmem [resolvable:$true] %s17
      %23 = dma.hbm_to_vmem [thread:$0]  %s16, 2048, %s18, [#allocation3], 128, 128, 8
    $region5: #{tpu_custom_call.1} parent=1 // pred_fallthru
      _
    // Predicated region
    $region6: #{tpu_custom_call.1} parent=1 // pred_check
      _
    $region7: #{tpu_custom_call.1} parent=1 // pred_check_branch
      %25 = sbr.rel (0) target = $region9
    $region8: #{tpu_custom_call.1} parent=1 // pred_region
      %27 = vsyncadd [#allocation6], 0
      %s28 = sshll.u32 %s1, 4
      %s29 = int_to_ptr.hbm [resolvable:$true] %s28
      %s30 = sshll.u32 [#allocation5], 4
      %s31 = int_to_ptr.vmem [resolvable:$true] %s30
      %36 = dma.hbm_to_vmem [thread:$0]  %s29, 2048, %s31, [#allocation6], 128, 128, 8
    $region9: #{tpu_custom_call.1} parent=1 // pred_fallthru
      _
    // Predicated region
    $region10: #{tpu_custom_call.1} parent=1 // pred_check
      _
    $region11: #{tpu_custom_call.1} parent=1 // pred_check_branch
      %38 = sbr.rel (0) target = $region13
    $region12: #{tpu_custom_call.1} parent=1 // pred_region
      _
    $region13: #{tpu_custom_call.1} parent=1 // pred_fallthru
      _
    // Predicated region
    $region14: #{tpu_custom_call.1} parent=1 // pred_check
      _
    $region15: #{tpu_custom_call.1} parent=1 // pred_check_branch
      %40 = sbr.rel (0) target = $region17
    $region16: #{tpu_custom_call.1} parent=1 // pred_region
      %42 = dma.done [#allocation3], 2048
    $region17: #{tpu_custom_call.1} parent=1 // pred_fallthru
      _
    // Predicated region
    $region18: #{tpu_custom_call.1} parent=1 // pred_check
      _
    $region19: #{tpu_custom_call.1} parent=1 // pred_check_branch
      %44 = sbr.rel (0) target = $region21
    $region20: #{tpu_custom_call.1} parent=1 // pred_region
      %46 = dma.done [#allocation6], 2048
    $region21: #{tpu_custom_call.1} parent=1 // pred_fallthru
      _
    %v47 = vld [vmem:[#allocation2] sm:$0xff]
    %v48 = vld [vmem:[#allocation2 + $0x8] sm:$0xff]
    %v49 = vld [vmem:[#allocation2 + $0x10] sm:$0xff]
    %v50 = vld [vmem:[#allocation2 + $0x18] sm:$0xff]
    %v51 = vld [vmem:[#allocation2 + $0x20] sm:$0xff]
    %v52 = vld [vmem:[#allocation2 + $0x28] sm:$0xff]
    %v53 = vld [vmem:[#allocation2 + $0x30] sm:$0xff]
    %v54 = vld [vmem:[#allocation2 + $0x38] sm:$0xff]
    %v55 = vld [vmem:[#allocation2 + $0x40] sm:$0xff]
    %v56 = vld [vmem:[#allocation2 + $0x48] sm:$0xff]
    %v57 = vld [vmem:[#allocation2 + $0x50] sm:$0xff]
    %v58 = vld [vmem:[#allocation2 + $0x58] sm:$0xff]
    %v59 = vld [vmem:[#allocation2 + $0x60] sm:$0xff]
    %v60 = vld [vmem:[#allocation2 + $0x68] sm:$0xff]
    %v61 = vld [vmem:[#allocation2 + $0x70] sm:$0xff]
    %v62 = vld [vmem:[#allocation2 + $0x78] sm:$0xff]
    %v63 = vld [vmem:[#allocation5] sm:$0xff]
    %v64 = vld [vmem:[#allocation5 + $0x8] sm:$0xff]
    %v65 = vld [vmem:[#allocation5 + $0x10] sm:$0xff]
    %v66 = vld [vmem:[#allocation5 + $0x18] sm:$0xff]
    %v67 = vld [vmem:[#allocation5 + $0x20] sm:$0xff]
    %v68 = vld [vmem:[#allocation5 + $0x28] sm:$0xff]
    %v69 = vld [vmem:[#allocation5 + $0x30] sm:$0xff]
    %v70 = vld [vmem:[#allocation5 + $0x38] sm:$0xff]
    %v71 = vld [vmem:[#allocation5 + $0x40] sm:$0xff]
    %v72 = vld [vmem:[#allocation5 + $0x48] sm:$0xff]
    %v73 = vld [vmem:[#allocation5 + $0x50] sm:$0xff]
    %v74 = vld [vmem:[#allocation5 + $0x58] sm:$0xff]
    %v75 = vld [vmem:[#allocation5 + $0x60] sm:$0xff]
    %v76 = vld [vmem:[#allocation5 + $0x68] sm:$0xff]
    %v77 = vld [vmem:[#allocation5 + $0x70] sm:$0xff]
    %v78 = vld [vmem:[#allocation5 + $0x78] sm:$0xff]
    %v79 = vld [vmem:[%s2] sm:$0x1]
    %v81 = vperm.slane %v79, 0
    %83 = vmatpush.msra.mxu0 %v78
    %84 = vmatpush.msra.mxu0 %v77
    %85 = vmatpush.msra.mxu0 %v76
    %86 = vmatpush.msra.mxu0 %v75
    %87 = vmatpush.msra.mxu0 %v74
    %88 = vmatpush.msra.mxu0 %v73
    %89 = vmatpush.msra.mxu0 %v72
    %90 = vmatpush.msra.mxu0 %v71
    %91 = vmatpush.msra.mxu0 %v70
    %92 = vmatpush.msra.mxu0 %v69
    %93 = vmatpush.msra.mxu0 %v68
    %94 = vmatpush.msra.mxu0 %v67
    %95 = vmatpush.msra.mxu0 %v66
    %96 = vmatpush.msra.mxu0 %v65
    %97 = vmatpush.msra.mxu0 %v64
    %98 = vmatpush.msra.mxu0 %v63
    %99 = vmatmul.f32.gmra.mxu0 %v47
    %v100 = vpop.f32.mrf.mxu0
    %v101 = vadd.f32 %v81, %v100
    %102 = vmatmul.f32.gmra.mxu0 %v48
    %v103 = vpop.f32.mrf.mxu0
    %v104 = vadd.f32 %v81, %v103
    %105 = vmatmul.f32.gmra.mxu0 %v49
    %v106 = vpop.f32.mrf.mxu0
    %v107 = vadd.f32 %v81, %v106
    %108 = vmatmul.f32.gmra.mxu0 %v50
    %v109 = vpop.f32.mrf.mxu0
    %v110 = vadd.f32 %v81, %v109
    %111 = vmatmul.f32.gmra.mxu0 %v51
    %v112 = vpop.f32.mrf.mxu0
    %v113 = vadd.f32 %v81, %v112
    %114 = vmatmul.f32.gmra.mxu0 %v52
    %v115 = vpop.f32.mrf.mxu0
    %v116 = vadd.f32 %v81, %v115
    %117 = vmatmul.f32.gmra.mxu0 %v53
    %v118 = vpop.f32.mrf.mxu0
    %v119 = vadd.f32 %v81, %v118
    %120 = vmatmul.f32.gmra.mxu0 %v54
    %v121 = vpop.f32.mrf.mxu0
    %v122 = vadd.f32 %v81, %v121
    %123 = vmatmul.f32.gmra.mxu0 %v55
    %v124 = vpop.f32.mrf.mxu0
    %v125 = vadd.f32 %v81, %v124
    %126 = vmatmul.f32.gmra.mxu0 %v56
    %v127 = vpop.f32.mrf.mxu0
    %v128 = vadd.f32 %v81, %v127
    %129 = vmatmul.f32.gmra.mxu0 %v57
    %v130 = vpop.f32.mrf.mxu0
    %v131 = vadd.f32 %v81, %v130
    %132 = vmatmul.f32.gmra.mxu0 %v58
    %v133 = vpop.f32.mrf.mxu0
    %v134 = vadd.f32 %v81, %v133
    %135 = vmatmul.f32.gmra.mxu0 %v59
    %v136 = vpop.f32.mrf.mxu0
    %v137 = vadd.f32 %v81, %v136
    %138 = vmatmul.f32.gmra.mxu0 %v60
    %v139 = vpop.f32.mrf.mxu0
    %v140 = vadd.f32 %v81, %v139
    %141 = vmatmul.f32.gmra.mxu0 %v61
    %v142 = vpop.f32.mrf.mxu0
    %v143 = vadd.f32 %v81, %v142
    %144 = vmatmul.f32.gmra.mxu0 %v62
    %v145 = vpop.f32.mrf.mxu0
    %v146 = vadd.f32 %v81, %v145
    %147 = vdwg.mxu0
    %v148 = vpack.c.bf16 %v101, %v101
    %v149 = vpack.c.bf16 %v104, %v104
    %v150 = vpack.c.bf16 %v107, %v107
    %v151 = vpack.c.bf16 %v110, %v110
    %v152 = vpack.c.bf16 %v113, %v113
    %v153 = vpack.c.bf16 %v116, %v116
    %v154 = vpack.c.bf16 %v119, %v119
    %v155 = vpack.c.bf16 %v122, %v122
    %v156 = vpack.c.bf16 %v125, %v125
    %v157 = vpack.c.bf16 %v128, %v128
    %v158 = vpack.c.bf16 %v131, %v131
    %v159 = vpack.c.bf16 %v134, %v134
    %v160 = vpack.c.bf16 %v137, %v137
    %v161 = vpack.c.bf16 %v140, %v140
    %v162 = vpack.c.bf16 %v143, %v143
    %v163 = vpack.c.bf16 %v146, %v146
    %164 = vst [vmem:[#allocation7] sm:$0xf] %v148
    %165 = vst [vmem:[#allocation7 + $0x4] sm:$0xf] %v149
    %166 = vst [vmem:[#allocation7 + $0x8] sm:$0xf] %v150
    %167 = vst [vmem:[#allocation7 + $0xc] sm:$0xf] %v151
    %168 = vst [vmem:[#allocation7 + $0x10] sm:$0xf] %v152
    %169 = vst [vmem:[#allocation7 + $0x14] sm:$0xf] %v153
    %170 = vst [vmem:[#allocation7 + $0x18] sm:$0xf] %v154
    %171 = vst [vmem:[#allocation7 + $0x1c] sm:$0xf] %v155
    %172 = vst [vmem:[#allocation7 + $0x20] sm:$0xf] %v156
    %173 = vst [vmem:[#allocation7 + $0x24] sm:$0xf] %v157
    %174 = vst [vmem:[#allocation7 + $0x28] sm:$0xf] %v158
    %175 = vst [vmem:[#allocation7 + $0x2c] sm:$0xf] %v159
    %176 = vst [vmem:[#allocation7 + $0x30] sm:$0xf] %v160
    %177 = vst [vmem:[#allocation7 + $0x34] sm:$0xf] %v161
    %178 = vst [vmem:[#allocation7 + $0x38] sm:$0xf] %v162
    %179 = vst [vmem:[#allocation7 + $0x3c] sm:$0xf] %v163
    // Predicated region
    $region22: #{tpu_custom_call.1} parent=1 // pred_check
      _
    $region23: #{tpu_custom_call.1} parent=1 // pred_check_branch
      %181 = sbr.rel (0) target = $region25
    $region24: #{tpu_custom_call.1} parent=1 // pred_region
      %183 = vsyncadd [#allocation4], 0
      %s184 = sshll.u32 [#allocation7], 4
      %s185 = int_to_ptr.vmem [resolvable:$true] %s184
      %s186 = sshll.u32 %s3, 4
      %s187 = int_to_ptr.hbm [resolvable:$true] %s186
      %192 = dma.vmem_to_hbm [thread:$0]  %s185, 1024, %s187, [#allocation4], 64, 64, 4
    $region25: #{tpu_custom_call.1} parent=1 // pred_fallthru
      _
    // Predicated region
    $region26: #{tpu_custom_call.1} parent=1 // pred_check
      _
    $region27: #{tpu_custom_call.1} parent=1 // pred_check_branch
      %194 = sbr.rel (0) target = $region29
    $region28: #{tpu_custom_call.1} parent=1 // pred_region
      %196 = dma.done [#allocation4], 1024
    $region29: #{tpu_custom_call.1} parent=1 // pred_fallthru
      _
    %197 = vsyncpa [#allocation3], 1
    %198 = vsyncpa [#allocation6], 1
    %199 = vsyncpa [#allocation4], 1

</llo_original>
